<compile_context>
chip_gen: v7x
topology: tpu7x:2x2x1
jax: 0.10.0
libtpu: 0.0.40
codegen_flags: <defaults>
</compile_context>

<pallas_src>
import jax
import jax.numpy as jnp
from jax.experimental import pallas as pl
from jax.experimental.pallas import tpu as pltpu

EPS = 1e-5
LANE = 128


def _softplus(x):
    # numerically stable softplus: max(x, 0) + log1p(exp(-|x|))
    return jnp.maximum(x, 0.0) + jnp.log1p(jnp.exp(-jnp.abs(x)))


def prediction_kernel(x_ref, w1_ref, g1_ref, be1_ref,
                      w2_ref, b2_ref, w3_ref, b3_ref, o_ref):
    # x_ref: (Gb, B, E) bf16 (pre-cast in wrapper); weights bf16; bn affine / biases f32;
    # o_ref: (Gb, B, S_pad) f32.
    gb, bsz, e = x_ref.shape
    h = w1_ref.shape[1]
    s_pad = o_ref.shape[2]

    # --- fc1 over all packed groups at once (Gb*B MXU rows) ---
    # fc1 bias omitted: exactly cancelled by bn1's train-mode mean subtraction.
    x2d = x_ref[...].reshape(gb * bsz, e)
    h1 = jnp.dot(x2d, w1_ref[...], preferred_element_type=jnp.float32)      # (Gb*B, H) f32

    # --- bn1: per-group whole-batch statistics on the (Gb, B, H) view ---
    # two-pass (centered) variance: no E[x^2]-E[x]^2 cancellation risk.
    h1g = h1.reshape(gb, bsz, h)
    mu = jnp.mean(h1g, axis=1, keepdims=True)                               # (Gb, 1, H)
    d = h1g - mu
    var = jnp.mean(d * d, axis=1, keepdims=True)                            # biased (torch train mode)
    scale = g1_ref[...] * jax.lax.rsqrt(var + EPS)                          # (1,H) bcast -> (Gb,1,H)
    h1g = jnp.maximum(d * scale + be1_ref[...], 0.0)                        # bn1 + relu

    # --- fc2 + relu (bn2 output is discarded in the PyTorch forward) ---
    h1b = h1g.reshape(gb * bsz, h).astype(jnp.bfloat16)
    h2 = jnp.dot(h1b, w2_ref[...], preferred_element_type=jnp.float32) + b2_ref[...]
    h2 = jnp.maximum(h2, 0.0)

    # --- fc3 (lane-padded to 128 output columns -> full unmasked vst) + softplus ---
    h3 = jnp.dot(h2.astype(jnp.bfloat16), w3_ref[...],
                 preferred_element_type=jnp.float32) + b3_ref[...]
    o_ref[...] = _softplus(h3).reshape(gb, bsz, s_pad)


def _pick_groups_per_block(num_groups, batch, target_rows=256):
    """Largest divisor Gb of num_groups with Gb*batch <= ~target_rows MXU rows, while
    keeping >= 2 grid steps so both v7x TensorCores get blocks."""
    if num_groups <= 1:
        return 1
    cap = max(1, target_rows // max(batch, 1))
    best = 1
    for gb in range(1, num_groups + 1):
        if num_groups % gb == 0 and gb <= cap and num_groups // gb >= 2:
            best = gb
    return best


def prediction_module_grouped(xg, kp, state_dim, groups_per_block=None):
    """xg: (G, B, E) f32 -- G independent BatchNorm batches of B rows each.
    Returns (G, B, state_dim) f32.  Gb groups are packed per grid step (each group's
    whole-batch bn stats stay inside one block); weights stay resident across the grid."""
    G, B, E = xg.shape
    H = kp["w1"].shape[1]
    s_pad = kp["w3"].shape[1]

    gb = groups_per_block if groups_per_block is not None else _pick_groups_per_block(G, B)
    assert G % gb == 0, "groups_per_block must divide the number of groups"
    steps = G // gb

    def const(shape):
        # full-array block, constant index -> stays resident across grid steps
        # (default double-buffering of these ~70 KB of weights is negligible here)
        return pl.BlockSpec(shape, lambda t: (0,) * len(shape))

    # per-step VMEM budget: double-buffered x/out blocks + weights + f32 intermediates,
    # 4x headroom, clamped to stay well inside v7x's 64 MiB physical VMEM.
    x_b = gb * B * E * 2
    o_b = gb * B * s_pad * 4
    w_b = (E * H + H * H + H * s_pad) * 2 + (4 * H + 2 * s_pad) * 4
    inter_b = gb * B * (4 * H * 4 + 2 * s_pad * 4)
    vmem_bytes = int(min(max(4 * (2 * (x_b + o_b) + 2 * w_b + inter_b), 16 << 20), 48 << 20))

    xg_bf16 = xg.astype(jnp.bfloat16)   # pre-cast: halves x DMA bytes, no in-kernel cast

    out = pl.pallas_call(
        prediction_kernel,
        out_shape=jax.ShapeDtypeStruct((G, B, s_pad), jnp.float32),
        grid=(steps,),
        in_specs=[
            pl.BlockSpec((gb, B, E), lambda t: (t, 0, 0)),                  # packed x groups
            const((E, H)),                                                  # w1 (bf16)
            const((1, H)), const((1, H)),                                   # bn1 gamma / beta
            const((H, H)), const((1, H)),                                   # w2 (bf16), b2
            const((H, s_pad)), const((1, s_pad)),                           # w3 (bf16, padded), b3
        ],
        out_specs=pl.BlockSpec((gb, B, s_pad), lambda t: (t, 0, 0)),
        compiler_params=pltpu.CompilerParams(
            dimension_semantics=("parallel",),      # shards blocks across v7x's two TCs
            vmem_limit_bytes=vmem_bytes),
    )(xg_bf16, kp["w1"], kp["g1"], kp["be1"], kp["w2"], kp["b2"], kp["w3"], kp["b3"])

    # TODO(synk): at large G*B the padded-f32 writeback + this XLA slice dominate HBM bytes;
    # let consumers read the lane-padded buffer directly (or store bf16) if they tolerate it.
    return out[..., :state_dim]


def prediction_module(x, kp, state_dim):
    """x: (B, embed_dim) f32 -- a single BatchNorm batch (PredictionModule.forward)."""
    return prediction_module_grouped(x[None], kp, state_dim, groups_per_block=1)[0]


def init_params(key, embed_dim, state_dim, hidden_dim=128):
    """f32 parameters matching a freshly-constructed PyTorch PredictionModule."""
    ks = jax.random.split(key, 6)

    def linear(kw, kb, fan_in, fan_out):
        bound = 1.0 / jnp.sqrt(float(fan_in))
        w = jax.random.uniform(kw, (fan_in, fan_out), jnp.float32, -bound, bound)
        b = jax.random.uniform(kb, (1, fan_out), jnp.float32, -bound, bound)
        return w, b

    w1, b1 = linear(ks[0], ks[1], embed_dim, hidden_dim)
    w2, b2 = linear(ks[2], ks[3], hidden_dim, hidden_dim)
    w3, b3 = linear(ks[4], ks[5], hidden_dim, state_dim)
    return {
        "w1": w1, "b1": b1,
        "g1": jnp.ones((1, hidden_dim), jnp.float32),
        "be1": jnp.zeros((1, hidden_dim), jnp.float32),
        "w2": w2, "b2": b2,
        "w3": w3, "b3": b3,
    }


def prepare_kernel_params(p, state_dim):
    """One-time layout/dtype plumbing: bf16 weights for the MXU, drop the cancelled fc1 bias,
    lane-pad fc3 to 128 output columns for an unmasked final store."""
    H = p["w1"].shape[1]
    s_pad = ((state_dim + LANE - 1) // LANE) * LANE
    w3 = jnp.zeros((H, s_pad), jnp.float32).at[:, :state_dim].set(p["w3"])
    b3 = jnp.zeros((1, s_pad), jnp.float32).at[:, :state_dim].set(p["b3"])
    return {
        "w1": p["w1"].astype(jnp.bfloat16),
        "g1": p["g1"], "be1": p["be1"],
        "w2": p["w2"].astype(jnp.bfloat16), "b2": p["b2"],
        "w3": w3.astype(jnp.bfloat16), "b3": b3,
    }


# ---------------- references (pure JAX) ----------------

def reference_f32(x, p):
    """Exact f32 mirror of PredictionModule.forward (train-mode bn1)."""
    h1 = x @ p["w1"] + p["b1"]
    mu = h1.mean(0, keepdims=True)
    var = ((h1 - mu) ** 2).mean(0, keepdims=True)
    h1 = (h1 - mu) / jnp.sqrt(var + EPS) * p["g1"] + p["be1"]
    h1 = jax.nn.relu(h1)
    h2 = jax.nn.relu(h1 @ p["w2"] + p["b2"])
    return jax.nn.softplus(h2 @ p["w3"] + p["b3"])


def reference_bf16_matmul(x, p):
    """Same math with matmul inputs in bf16 / f32 accumulation (the kernel's precision)."""
    def dot(a, w):
        return jnp.dot(a.astype(jnp.bfloat16), w.astype(jnp.bfloat16),
                       preferred_element_type=jnp.float32)
    h1 = dot(x, p["w1"]) + p["b1"]
    mu = h1.mean(0, keepdims=True)
    var = ((h1 - mu) ** 2).mean(0, keepdims=True)
    h1 = (h1 - mu) / jnp.sqrt(var + EPS) * p["g1"] + p["be1"]
    h1 = jax.nn.relu(h1)
    h2 = jax.nn.relu(dot(h1, p["w2"]) + p["b2"])
    return jax.nn.softplus(dot(h2, p["w3"]) + p["b3"])


if __name__ == "__main__":
    B, embed_dim, state_dim, hidden_dim = 8, 32, 16, 128
    G = 8  # independent BatchNorm batches for the grouped / packed path

    key = jax.random.PRNGKey(0)
    kx, kg, kp_key = jax.random.split(key, 3)
    x = jax.random.normal(kx, (B, embed_dim), jnp.float32)
    xg = jax.random.normal(kg, (G, B, embed_dim), jnp.float32)

    params = init_params(kp_key, embed_dim, state_dim, hidden_dim)
    kparams = prepare_kernel_params(params, state_dim)

    # --- single-batch path (exactly PredictionModule.forward on one batch) ---
    out = jax.block_until_ready(prediction_module(x, kparams, state_dim))
    assert out.shape == (B, state_dim)
    # primary check: precision-matched (bf16 matmul) reference
    assert jnp.allclose(out, reference_bf16_matmul(x, params), atol=1e-3, rtol=1e-3), \
        "mismatch vs bf16-matmul reference"
    # secondary check: pure-f32 module semantics, tolerance re-baselined for bf16 matmuls
    assert jnp.allclose(out, reference_f32(x, params), atol=8e-2, rtol=8e-2), \
        "mismatch vs f32 reference"

    # --- grouped path: G batches packed Gb-per-block (auto Gb -> 4 here, grid=(2,)) ---
    outg = jax.block_until_ready(prediction_module_grouped(xg, kparams, state_dim))
    assert outg.shape == (G, B, state_dim)
    for g in range(G):
        assert jnp.allclose(outg[g], reference_bf16_matmul(xg[g], params),
                            atol=1e-3, rtol=1e-3), f"mismatch in group {g}"

    print("KERNEL_OK")
</pallas_src>

<mosaic_0001>
module attributes {stable_mosaic.version = 11 : i64} {
  func.func @prediction_kernel(%arg0: i32, %arg1: memref<1x8x32xbf16, #tpu.memory_space<vmem>>, %arg2: memref<32x128xbf16, #tpu.memory_space<vmem>>, %arg3: memref<1x128xf32, #tpu.memory_space<vmem>>, %arg4: memref<1x128xf32, #tpu.memory_space<vmem>>, %arg5: memref<128x128xbf16, #tpu.memory_space<vmem>>, %arg6: memref<1x128xf32, #tpu.memory_space<vmem>>, %arg7: memref<128x128xbf16, #tpu.memory_space<vmem>>, %arg8: memref<1x128xf32, #tpu.memory_space<vmem>>, %arg9: memref<1x8x128xf32, #tpu.memory_space<vmem>>) attributes {dimension_semantics = [#tpu.dimension_semantics<parallel>], iteration_bounds = array<i64: 1>, scalar_prefetch = 0 : i64, scratch_operands = 0 : i64, tpu.core_type = #tpu.core_type<tc>, window_params = [{transform_indices = @transform_0, window_bounds = array<i64: 1, 8, 32>}, {pipeline_mode = #tpu.pipeline_mode<synchronous>, transform_indices = @transform_1, window_bounds = array<i64: 32, 128>}, {pipeline_mode = #tpu.pipeline_mode<synchronous>, transform_indices = @transform_2, window_bounds = array<i64: 1, 128>}, {pipeline_mode = #tpu.pipeline_mode<synchronous>, transform_indices = @transform_3, window_bounds = array<i64: 1, 128>}, {pipeline_mode = #tpu.pipeline_mode<synchronous>, transform_indices = @transform_4, window_bounds = array<i64: 128, 128>}, {pipeline_mode = #tpu.pipeline_mode<synchronous>, transform_indices = @transform_5, window_bounds = array<i64: 1, 128>}, {pipeline_mode = #tpu.pipeline_mode<synchronous>, transform_indices = @transform_6, window_bounds = array<i64: 128, 128>}, {pipeline_mode = #tpu.pipeline_mode<synchronous>, transform_indices = @transform_7, window_bounds = array<i64: 1, 128>}, {transform_indices = @transform_8, window_bounds = array<i64: 1, 8, 128>}]} {
    %c0 = arith.constant 0 : index
    %c0_0 = arith.constant 0 : index
    %c0_1 = arith.constant 0 : index
    %0 = vector.load %arg1[%c0, %c0_0, %c0_1] : memref<1x8x32xbf16, #tpu.memory_space<vmem>>, vector<1x8x32xbf16>
    %1 = vector.shape_cast %0 : vector<1x8x32xbf16> to vector<8x32xbf16>
    %c0_2 = arith.constant 0 : index
    %c0_3 = arith.constant 0 : index
    %2 = vector.load %arg2[%c0_2, %c0_3] : memref<32x128xbf16, #tpu.memory_space<vmem>>, vector<32x128xbf16>
    %cst = arith.constant dense<0.000000e+00> : vector<8x128xf32>
    %3 = tpu.matmul %1, %2, %cst {dimension_numbers = #tpu.dot_dimension_numbers<[1], [0], [0], [1], [0, 0, 1, 1], [], []>} : vector<8x32xbf16>, vector<32x128xbf16>, vector<8x128xf32> -> vector<8x128xf32>
    %4 = vector.shape_cast %3 : vector<8x128xf32> to vector<1x8x128xf32>
    %cst_4 = arith.constant dense<0.000000e+00> : vector<1x128xf32>
    %5 = vector.multi_reduction <add>, %4, %cst_4 [1] : vector<1x8x128xf32> to vector<1x128xf32>
    %6 = vector.shape_cast %5 : vector<1x128xf32> to vector<1x1x128xf32>
    %cst_5 = arith.constant 8.000000e+00 : f32
    %7 = vector.broadcast %cst_5 : f32 to vector<1x1x128xf32>
    %8 = arith.divf %6, %7 : vector<1x1x128xf32>
    %9 = vector.broadcast %8 : vector<1x1x128xf32> to vector<1x8x128xf32>
    %10 = arith.subf %4, %9 : vector<1x8x128xf32>
    %11 = arith.mulf %10, %10 : vector<1x8x128xf32>
    %cst_6 = arith.constant dense<0.000000e+00> : vector<1x128xf32>
    %12 = vector.multi_reduction <add>, %11, %cst_6 [1] : vector<1x8x128xf32> to vector<1x128xf32>
    %13 = vector.shape_cast %12 : vector<1x128xf32> to vector<1x1x128xf32>
    %cst_7 = arith.constant 8.000000e+00 : f32
    %14 = vector.broadcast %cst_7 : f32 to vector<1x1x128xf32>
    %15 = arith.divf %13, %14 : vector<1x1x128xf32>
    %c0_8 = arith.constant 0 : index
    %c0_9 = arith.constant 0 : index
    %16 = vector.load %arg3[%c0_8, %c0_9] : memref<1x128xf32, #tpu.memory_space<vmem>>, vector<1x128xf32>
    %cst_10 = arith.constant 9.99999974E-6 : f32
    %17 = vector.broadcast %cst_10 : f32 to vector<1x1x128xf32>
    %18 = arith.addf %15, %17 : vector<1x1x128xf32>
    %19 = math.rsqrt %18 : vector<1x1x128xf32>
    %20 = vector.shape_cast %16 : vector<1x128xf32> to vector<1x1x128xf32>
    %21 = arith.mulf %20, %19 : vector<1x1x128xf32>
    %22 = vector.broadcast %21 : vector<1x1x128xf32> to vector<1x8x128xf32>
    %23 = arith.mulf %10, %22 : vector<1x8x128xf32>
    %c0_11 = arith.constant 0 : index
    %c0_12 = arith.constant 0 : index
    %24 = vector.load %arg4[%c0_11, %c0_12] : memref<1x128xf32, #tpu.memory_space<vmem>>, vector<1x128xf32>
    %25 = vector.shape_cast %24 : vector<1x128xf32> to vector<1x1x128xf32>
    %26 = vector.broadcast %25 : vector<1x1x128xf32> to vector<1x8x128xf32>
    %27 = arith.addf %23, %26 : vector<1x8x128xf32>
    %cst_13 = arith.constant 0.000000e+00 : f32
    %28 = vector.broadcast %cst_13 : f32 to vector<1x8x128xf32>
    %29 = arith.maximumf %27, %28 : vector<1x8x128xf32>
    %30 = vector.shape_cast %29 : vector<1x8x128xf32> to vector<8x128xf32>
    %31 = arith.truncf %30 : vector<8x128xf32> to vector<8x128xbf16>
    %c0_14 = arith.constant 0 : index
    %c0_15 = arith.constant 0 : index
    %32 = vector.load %arg5[%c0_14, %c0_15] : memref<128x128xbf16, #tpu.memory_space<vmem>>, vector<128x128xbf16>
    %cst_16 = arith.constant dense<0.000000e+00> : vector<8x128xf32>
    %33 = tpu.matmul %31, %32, %cst_16 {dimension_numbers = #tpu.dot_dimension_numbers<[1], [0], [0], [1], [0, 0, 1, 1], [], []>} : vector<8x128xbf16>, vector<128x128xbf16>, vector<8x128xf32> -> vector<8x128xf32>
    %c0_17 = arith.constant 0 : index
    %c0_18 = arith.constant 0 : index
    %34 = vector.load %arg6[%c0_17, %c0_18] : memref<1x128xf32, #tpu.memory_space<vmem>>, vector<1x128xf32>
    %35 = vector.broadcast %34 : vector<1x128xf32> to vector<8x128xf32>
    %36 = arith.addf %33, %35 : vector<8x128xf32>
    %cst_19 = arith.constant 0.000000e+00 : f32
    %37 = vector.broadcast %cst_19 : f32 to vector<8x128xf32>
    %38 = arith.maximumf %36, %37 : vector<8x128xf32>
    %39 = arith.truncf %38 : vector<8x128xf32> to vector<8x128xbf16>
    %c0_20 = arith.constant 0 : index
    %c0_21 = arith.constant 0 : index
    %40 = vector.load %arg7[%c0_20, %c0_21] : memref<128x128xbf16, #tpu.memory_space<vmem>>, vector<128x128xbf16>
    %cst_22 = arith.constant dense<0.000000e+00> : vector<8x128xf32>
    %41 = tpu.matmul %39, %40, %cst_22 {dimension_numbers = #tpu.dot_dimension_numbers<[1], [0], [0], [1], [0, 0, 1, 1], [], []>} : vector<8x128xbf16>, vector<128x128xbf16>, vector<8x128xf32> -> vector<8x128xf32>
    %c0_23 = arith.constant 0 : index
    %c0_24 = arith.constant 0 : index
    %42 = vector.load %arg8[%c0_23, %c0_24] : memref<1x128xf32, #tpu.memory_space<vmem>>, vector<1x128xf32>
    %43 = vector.broadcast %42 : vector<1x128xf32> to vector<8x128xf32>
    %44 = arith.addf %41, %43 : vector<8x128xf32>
    %cst_25 = arith.constant 0.000000e+00 : f32
    %45 = vector.broadcast %cst_25 : f32 to vector<8x128xf32>
    %46 = arith.maximumf %44, %45 : vector<8x128xf32>
    %47 = math.absf %44 : vector<8x128xf32>
    %cst_26 = arith.constant 0.000000e+00 : f32
    %48 = vector.broadcast %cst_26 : f32 to vector<8x128xf32>
    %49 = arith.subf %48, %47 : vector<8x128xf32>
    %50 = math.exp %49 : vector<8x128xf32>
    %51 = math.log1p %50 : vector<8x128xf32>
    %52 = arith.addf %46, %51 : vector<8x128xf32>
    %53 = vector.shape_cast %52 : vector<8x128xf32> to vector<1x8x128xf32>
    %c0_27 = arith.constant 0 : index
    %c0_28 = arith.constant 0 : index
    %c0_29 = arith.constant 0 : index
    %54 = vector.load %arg9[%c0_27, %c0_28, %c0_29] : memref<1x8x128xf32, #tpu.memory_space<vmem>>, vector<1x8x128xf32>
    tpu.vector_store %arg9[%c0_27, %c0_28, %c0_29], %53 {strides = array<i32>} : memref<1x8x128xf32, #tpu.memory_space<vmem>>, vector<1x8x128xf32>,
    return
  }
  func.func @transform_0(%arg0: i32) -> (i32, i32, i32) {
    %c0_i32 = arith.constant 0 : i32
    %c0_i32_0 = arith.constant 0 : i32
    %c0_i32_1 = arith.constant 0 : i32
    return %arg0, %c0_i32, %c0_i32_0 : i32, i32, i32
  }
  func.func @transform_1(%arg0: i32) -> (i32, i32) {
    %c0_i32 = arith.constant 0 : i32
    %c0_i32_0 = arith.constant 0 : i32
    %c0_i32_1 = arith.constant 0 : i32
    return %c0_i32, %c0_i32_0 : i32, i32
  }
  func.func @transform_2(%arg0: i32) -> (i32, i32) {
    %c0_i32 = arith.constant 0 : i32
    %c0_i32_0 = arith.constant 0 : i32
    %c0_i32_1 = arith.constant 0 : i32
    return %c0_i32, %c0_i32_0 : i32, i32
  }
  func.func @transform_3(%arg0: i32) -> (i32, i32) {
    %c0_i32 = arith.constant 0 : i32
    %c0_i32_0 = arith.constant 0 : i32
    %c0_i32_1 = arith.constant 0 : i32
    return %c0_i32, %c0_i32_0 : i32, i32
  }
  func.func @transform_4(%arg0: i32) -> (i32, i32) {
    %c0_i32 = arith.constant 0 : i32
    %c0_i32_0 = arith.constant 0 : i32
    %c0_i32_1 = arith.constant 0 : i32
    return %c0_i32, %c0_i32_0 : i32, i32
  }
  func.func @transform_5(%arg0: i32) -> (i32, i32) {
    %c0_i32 = arith.constant 0 : i32
    %c0_i32_0 = arith.constant 0 : i32
    %c0_i32_1 = arith.constant 0 : i32
    return %c0_i32, %c0_i32_0 : i32, i32
  }
  func.func @transform_6(%arg0: i32) -> (i32, i32) {
    %c0_i32 = arith.constant 0 : i32
    %c0_i32_0 = arith.constant 0 : i32
    %c0_i32_1 = arith.constant 0 : i32
    return %c0_i32, %c0_i32_0 : i32, i32
  }
  func.func @transform_7(%arg0: i32) -> (i32, i32) {
    %c0_i32 = arith.constant 0 : i32
    %c0_i32_0 = arith.constant 0 : i32
    %c0_i32_1 = arith.constant 0 : i32
    return %c0_i32, %c0_i32_0 : i32, i32
  }
  func.func @transform_8(%arg0: i32) -> (i32, i32, i32) {
    %c0_i32 = arith.constant 0 : i32
    %c0_i32_0 = arith.constant 0 : i32
    %c0_i32_1 = arith.constant 0 : i32
    return %arg0, %c0_i32, %c0_i32_0 : i32, i32, i32
  }
}

</mosaic_0001>

<llo_original>
// kernel: tpu_custom_call.1
$region0: #{tpu_custom_call.1}
  #allocation0 [shape = 'u32[]', space=smem, size = 0x4, offset = 0x4, fixed_abs, tag = 'smem constant byte address 0x4 - core index']
  #allocation1 [shape = 'u32[144,128]{1,0:T(1,128)}', space=vmem, size = 0x12000, scoped, tag = 'internal scratch']
  %s0 = inlined_call_operand.hbm [shape: bf16[1,8,32], index: 0, kind: input, shape index: {}]
  %s1 = inlined_call_operand.hbm [shape: bf16[32,128], index: 1, kind: input, shape index: {}]
  %s2 = inlined_call_operand.vmem [shape: f32[1,128], index: 2, kind: input, shape index: {}]
  %s3 = inlined_call_operand.vmem [shape: f32[1,128], index: 3, kind: input, shape index: {}]
  %s4 = inlined_call_operand.hbm [shape: bf16[128,128], index: 4, kind: input, shape index: {}]
  %s5 = inlined_call_operand.vmem [shape: f32[1,128], index: 5, kind: input, shape index: {}]
  %s6 = inlined_call_operand.hbm [shape: bf16[128,128], index: 6, kind: input, shape index: {}]
  %s7 = inlined_call_operand.vmem [shape: f32[1,128], index: 7, kind: input, shape index: {}]
  %s8 = inlined_call_operand.hbm [shape: f32[1,8,128], index: 8, kind: output, shape index: {}]
  %s9 = sld [smem:[#allocation0]]
  $region58: #{tpu_custom_call.1} parent=0
    _
  %s11 = ssub.s32 1, %s9
  %s12 = scalar_select 0, %s11, %s9
  $region1: #{tpu_custom_call.1} parent=0
    #allocation2 [shape = 'u8[2048]{0}', space=vmem, size = 0x800, scoped, tag = 'input window, operand 0, single buffered']
    #allocation3 [shape = 's32[1]{0}', space=sflag, size = 0x4, scoped, tag = 'scoped memory for tpu_custom_call.1']
    #allocation4 [shape = 's32[1]{0}', space=sflag, size = 0x4, scoped, tag = 'scoped memory for tpu_custom_call.1']
    #allocation5 [shape = 'u8[8192]{0}', space=vmem, size = 0x2000, scoped, tag = 'input window, operand 1, single buffered']
    #allocation6 [shape = 's32[1]{0}', space=sflag, size = 0x4, scoped, tag = 'scoped memory for tpu_custom_call.1']
    #allocation7 [shape = 'u8[32768]{0}', space=vmem, size = 0x8000, scoped, tag = 'input window, operand 4, single buffered']
    #allocation8 [shape = 'u8[32768]{0}', space=vmem, size = 0x8000, scoped, tag = 'input window, operand 6, single buffered']
    #allocation9 [shape = 's32[1]{0}', space=sflag, size = 0x4, scoped, tag = 'scoped memory for tpu_custom_call.1']
    #allocation10 [shape = 'u8[4096]{0}', space=vmem, size = 0x1000, scoped, tag = 'output window, operand 0, single buffered']
    %13 = vsyncpa [#allocation3], 0
    %14 = vsyncpa [#allocation6], 0
    %15 = vsyncpa [#allocation9], 0
    %16 = vsyncpa [#allocation4], 0
    // Predicated region
    $region2: #{tpu_custom_call.1} parent=1 // pred_check
      _
    $region3: #{tpu_custom_call.1} parent=1 // pred_check_branch
      %18 = sbr.rel (0) target = $region5
    $region4: #{tpu_custom_call.1} parent=1 // pred_region
      %s20 = ssub.s32 64, 64
      %21 = vsyncadd [#allocation3], %s20
      %s23 = sshll.u32 [#allocation2], 4
      %s24 = int_to_ptr.vmem [resolvable:$true] %s23
      %26 = dma.hbm_to_vmem [thread:$0]  %s0, 64, %s24, [#allocation3]
    $region5: #{tpu_custom_call.1} parent=1 // pred_fallthru
      _
    // Predicated region
    $region6: #{tpu_custom_call.1} parent=1 // pred_check
      _
    $region7: #{tpu_custom_call.1} parent=1 // pred_check_branch
      %28 = sbr.rel (0) target = $region9
    $region8: #{tpu_custom_call.1} parent=1 // pred_region
      %s30 = ssub.s32 256, 256
      %31 = vsyncadd [#allocation6], %s30
      %s32 = sshll.u32 [#allocation5], 4
      %s33 = int_to_ptr.vmem [resolvable:$true] %s32
      %38 = dma.hbm_to_vmem [thread:$0]  %s1, 256, %s33, [#allocation6], 64, 64, 4
    $region9: #{tpu_custom_call.1} parent=1 // pred_fallthru
      _
    // Predicated region
    $region10: #{tpu_custom_call.1} parent=1 // pred_check
      _
    $region11: #{tpu_custom_call.1} parent=1 // pred_check_branch
      %40 = sbr.rel (0) target = $region13
    $region12: #{tpu_custom_call.1} parent=1 // pred_region
      _
    $region13: #{tpu_custom_call.1} parent=1 // pred_fallthru
      _
    // Predicated region
    $region14: #{tpu_custom_call.1} parent=1 // pred_check
      _
    $region15: #{tpu_custom_call.1} parent=1 // pred_check_branch
      %42 = sbr.rel (0) target = $region17
    $region16: #{tpu_custom_call.1} parent=1 // pred_region
      _
    $region17: #{tpu_custom_call.1} parent=1 // pred_fallthru
      _
    // Predicated region
    $region18: #{tpu_custom_call.1} parent=1 // pred_check
      _
    $region19: #{tpu_custom_call.1} parent=1 // pred_check_branch
      %44 = sbr.rel (0) target = $region21
    $region20: #{tpu_custom_call.1} parent=1 // pred_region
      %s46 = ssub.s32 1024, 1024
      %47 = vsyncadd [#allocation6], %s46
      %s48 = sshll.u32 [#allocation7], 4
      %s49 = int_to_ptr.vmem [resolvable:$true] %s48
      %54 = dma.hbm_to_vmem [thread:$0]  %s4, 1024, %s49, [#allocation6], 64, 64, 4
    $region21: #{tpu_custom_call.1} parent=1 // pred_fallthru
      _
    // Predicated region
    $region22: #{tpu_custom_call.1} parent=1 // pred_check
      _
    $region23: #{tpu_custom_call.1} parent=1 // pred_check_branch
      %56 = sbr.rel (0) target = $region25
    $region24: #{tpu_custom_call.1} parent=1 // pred_region
      _
    $region25: #{tpu_custom_call.1} parent=1 // pred_fallthru
      _
    // Predicated region
    $region26: #{tpu_custom_call.1} parent=1 // pred_check
      _
    $region27: #{tpu_custom_call.1} parent=1 // pred_check_branch
      %58 = sbr.rel (0) target = $region29
    $region28: #{tpu_custom_call.1} parent=1 // pred_region
      %s60 = ssub.s32 1024, 1024
      %61 = vsyncadd [#allocation9], %s60
      %s62 = sshll.u32 [#allocation8], 4
      %s63 = int_to_ptr.vmem [resolvable:$true] %s62
      %68 = dma.hbm_to_vmem [thread:$0]  %s6, 1024, %s63, [#allocation9], 64, 64, 4
    $region29: #{tpu_custom_call.1} parent=1 // pred_fallthru
      _
    // Predicated region
    $region30: #{tpu_custom_call.1} parent=1 // pred_check
      _
    $region31: #{tpu_custom_call.1} parent=1 // pred_check_branch
      %70 = sbr.rel (0) target = $region33
    $region32: #{tpu_custom_call.1} parent=1 // pred_region
      _
    $region33: #{tpu_custom_call.1} parent=1 // pred_fallthru
      _
    // Predicated region
    $region34: #{tpu_custom_call.1} parent=1 // pred_check
      _
    $region35: #{tpu_custom_call.1} parent=1 // pred_check_branch
      %72 = sbr.rel (0) target = $region37
    $region36: #{tpu_custom_call.1} parent=1 // pred_region
      %73 = dma.done [#allocation3], 64
    $region37: #{tpu_custom_call.1} parent=1 // pred_fallthru
      _
    // Predicated region
    $region38: #{tpu_custom_call.1} parent=1 // pred_check
      _
    $region39: #{tpu_custom_call.1} parent=1 // pred_check_branch
      %75 = sbr.rel (0) target = $region41
    $region40: #{tpu_custom_call.1} parent=1 // pred_region
      %76 = dma.done [#allocation6], 256
    $region41: #{tpu_custom_call.1} parent=1 // pred_fallthru
      _
    // Predicated region
    $region42: #{tpu_custom_call.1} parent=1 // pred_check
      _
    $region43: #{tpu_custom_call.1} parent=1 // pred_check_branch
      %78 = sbr.rel (0) target = $region45
    $region44: #{tpu_custom_call.1} parent=1 // pred_region
      %79 = dma.done [#allocation6], 1024
    $region45: #{tpu_custom_call.1} parent=1 // pred_fallthru
      _
    // Predicated region
    $region46: #{tpu_custom_call.1} parent=1 // pred_check
      _
    $region47: #{tpu_custom_call.1} parent=1 // pred_check_branch
      %81 = sbr.rel (0) target = $region49
    $region48: #{tpu_custom_call.1} parent=1 // pred_region
      %82 = dma.done [#allocation9], 1024
    $region49: #{tpu_custom_call.1} parent=1 // pred_fallthru
      _
    %v84 = vld [vmem:[#allocation2] sm:$0xf]
    %v85 = vld [vmem:[#allocation5] sm:$0xf]
    %v86 = vld [vmem:[#allocation5 + $0x4] sm:$0xf]
    %v87 = vld [vmem:[#allocation5 + $0x8] sm:$0xf]
    %v88 = vld [vmem:[#allocation5 + $0xc] sm:$0xf]
    %v93 = vunpack.c.l.b16 %v85
    %v94 = vunpack.c.l.b16 %v86
    %v95 = vunpack.c.l.b16 %v87
    %v96 = vunpack.c.l.b16 %v88
    %v97 = vpack.c.b16 %v94, %v93
    %v98 = vpack.c.b16 %v96, %v95
    %vm101 = vcmask 261120
    %v103 = vsel %vm101, %v84, 0
    %105 = vmatprep.subr.bf16.mxu0 0
    %106 = vmatpush1.bf16.msra.mxu0 %v97
    %107 = vmatprep.subr.bf16.mxu0 0
    %108 = vmatpush1.bf16.msra.mxu0 %v98
    %109 = vmatprep.subr.bf16.mxu0 0
    %110 = vmatpush1.bf16.msra.mxu0 0
    %111 = vmatprep.subr.bf16.mxu0 0
    %112 = vmatpush1.bf16.msra.mxu0 0
    %113 = vmatprep.subr.bf16.mxu0 0
    %114 = vmatpush1.bf16.msra.mxu0 0
    %115 = vmatprep.subr.bf16.mxu0 0
    %116 = vmatpush1.bf16.msra.mxu0 0
    %117 = vmatprep.subr.bf16.mxu0 0
    %118 = vmatpush1.bf16.msra.mxu0 0
    %119 = vmatprep.subr.bf16.mxu0 0
    %120 = vmatpush1.bf16.msra.mxu0 0
    %121 = vmatprep.subr.bf16.mxu0 0
    %122 = vmatpush1.bf16.msra.mxu0 0
    %123 = vmatprep.subr.bf16.mxu0 0
    %124 = vmatpush1.bf16.msra.mxu0 0
    %125 = vmatprep.subr.bf16.mxu0 0
    %126 = vmatpush1.bf16.msra.mxu0 0
    %127 = vmatprep.subr.bf16.mxu0 0
    %128 = vmatpush1.bf16.msra.mxu0 0
    %129 = vmatprep.subr.bf16.mxu0 0
    %130 = vmatpush1.bf16.msra.mxu0 0
    %131 = vmatprep.subr.bf16.mxu0 0
    %132 = vmatpush1.bf16.msra.mxu0 0
    %133 = vmatprep.subr.bf16.mxu0 0
    %134 = vmatpush1.bf16.msra.mxu0 0
    %135 = vmatprep.subr.bf16.mxu0 0
    %136 = vmatpush1.bf16.msra.mxu0 0
    %137 = vmatprep.mubr.bf16.mxu0 0
    %138 = vmatmul.mubr.bf16.gmra.mrb[0].mxu0 %v103
    %v139 = vpop.f32.mrb[0].mxu0
    %v140 = vadd.f32 0.0, %v139
    %v141 = vpop.f32.mrb[0].mxu0
    %v142 = vpop.f32.mrb[0].mxu0
    %v143 = vpop.f32.mrb[0].mxu0
    %144 = vdwg.mxu0
    %v145 = vrot.slane %v140, 4
    %v146 = vadd.f32 %v140, %v145
    %v147 = vrot.slane %v146, 2
    %v148 = vadd.f32 %v146, %v147
    %v149 = vrot.slane %v148, 1
    %v150 = vadd.f32 %v148, %v149
    %v151 = vrcp.pop 8.0
    %v152 = vmul.f32 %v150, %v151
    %v153 = vsub.f32 %v140, %v152
    %v154 = vmul.f32 %v153, %v153
    %v155 = vrot.slane %v154, 4
    %v156 = vadd.f32 %v154, %v155
    %v157 = vrot.slane %v156, 2
    %v158 = vadd.f32 %v156, %v157
    %v159 = vrot.slane %v158, 1
    %v160 = vadd.f32 %v158, %v159
    %v161 = vmul.f32 %v160, %v151
    %v162 = vld [vmem:[%s2] sm:$0x1]
    %v163 = vadd.f32 %v161, 1e-05
    %v164 = vrsqrt.pop %v163
    %v165 = vmul.f32 %v162, %v164
    %v167 = vlaneseq
    %v168 = vshrl.u32 %v167, 7
    %v169 = vsub.s32 0, %v168
    %v170 = vrot.slane %v165, %v169
    %v172 = vmul.f32 %v153, %v170
    %v173 = vld [vmem:[%s3] sm:$0x1]
    %v175 = vlaneseq
    %v176 = vshrl.u32 %v175, 7
    %v177 = vsub.s32 0, %v176
    %v178 = vrot.slane %v173, %v177
    %v180 = vadd.f32 %v172, %v178
    %v181 = vmax.f32 %v180, 0.0
    %v182 = vpack.c.bf16 %v181, %v181
    %v183 = vld [vmem:[#allocation7] sm:$0xf]
    %v184 = vld [vmem:[#allocation7 + $0x4] sm:$0xf]
    %v185 = vld [vmem:[#allocation7 + $0x8] sm:$0xf]
    %v186 = vld [vmem:[#allocation7 + $0xc] sm:$0xf]
    %v187 = vld [vmem:[#allocation7 + $0x10] sm:$0xf]
    %v188 = vld [vmem:[#allocation7 + $0x14] sm:$0xf]
    %v189 = vld [vmem:[#allocation7 + $0x18] sm:$0xf]
    %v190 = vld [vmem:[#allocation7 + $0x1c] sm:$0xf]
    %v191 = vld [vmem:[#allocation7 + $0x20] sm:$0xf]
    %v192 = vld [vmem:[#allocation7 + $0x24] sm:$0xf]
    %v193 = vld [vmem:[#allocation7 + $0x28] sm:$0xf]
    %v194 = vld [vmem:[#allocation7 + $0x2c] sm:$0xf]
    %v195 = vld [vmem:[#allocation7 + $0x30] sm:$0xf]
    %v196 = vld [vmem:[#allocation7 + $0x34] sm:$0xf]
    %v197 = vld [vmem:[#allocation7 + $0x38] sm:$0xf]
    %v198 = vld [vmem:[#allocation7 + $0x3c] sm:$0xf]
    %v199 = vld [vmem:[%s5] sm:$0x1]
    %v201 = vlaneseq
    %v202 = vshrl.u32 %v201, 7
    %v203 = vsub.s32 0, %v202
    %v204 = vrot.slane %v199, %v203
    %v222 = vunpack.c.l.b16 %v183
    %v223 = vunpack.c.l.b16 %v184
    %v224 = vunpack.c.l.b16 %v185
    %v225 = vunpack.c.l.b16 %v186
    %v226 = vunpack.c.l.b16 %v187
    %v227 = vunpack.c.l.b16 %v188
    %v228 = vunpack.c.l.b16 %v189
    %v229 = vunpack.c.l.b16 %v190
    %v230 = vunpack.c.l.b16 %v191
    %v231 = vunpack.c.l.b16 %v192
    %v232 = vunpack.c.l.b16 %v193
    %v233 = vunpack.c.l.b16 %v194
    %v234 = vunpack.c.l.b16 %v195
    %v235 = vunpack.c.l.b16 %v196
    %v236 = vunpack.c.l.b16 %v197
    %v237 = vunpack.c.l.b16 %v198
    %v238 = vpack.c.b16 %v223, %v222
    %v239 = vpack.c.b16 %v225, %v224
    %v240 = vpack.c.b16 %v227, %v226
    %v241 = vpack.c.b16 %v229, %v228
    %v242 = vpack.c.b16 %v231, %v230
    %v243 = vpack.c.b16 %v233, %v232
    %v244 = vpack.c.b16 %v235, %v234
    %v245 = vpack.c.b16 %v237, %v236
    %254 = vmatprep.subr.bf16.mxu0 0
    %255 = vmatpush1.bf16.msra.mxu0 %v238
    %256 = vmatprep.subr.bf16.mxu0 0
    %257 = vmatpush1.bf16.msra.mxu0 %v239
    %258 = vmatprep.subr.bf16.mxu0 0
    %259 = vmatpush1.bf16.msra.mxu0 %v240
    %260 = vmatprep.subr.bf16.mxu0 0
    %261 = vmatpush1.bf16.msra.mxu0 %v241
    %262 = vmatprep.subr.bf16.mxu0 0
    %263 = vmatpush1.bf16.msra.mxu0 %v242
    %264 = vmatprep.subr.bf16.mxu0 0
    %265 = vmatpush1.bf16.msra.mxu0 %v243
    %266 = vmatprep.subr.bf16.mxu0 0
    %267 = vmatpush1.bf16.msra.mxu0 %v244
    %268 = vmatprep.subr.bf16.mxu0 0
    %269 = vmatpush1.bf16.msra.mxu0 %v245
    %270 = vmatprep.subr.bf16.mxu0 0
    %271 = vmatpush1.bf16.msra.mxu0 0
    %272 = vmatprep.subr.bf16.mxu0 0
    %273 = vmatpush1.bf16.msra.mxu0 0
    %274 = vmatprep.subr.bf16.mxu0 0
    %275 = vmatpush1.bf16.msra.mxu0 0
    %276 = vmatprep.subr.bf16.mxu0 0
    %277 = vmatpush1.bf16.msra.mxu0 0
    %278 = vmatprep.subr.bf16.mxu0 0
    %279 = vmatpush1.bf16.msra.mxu0 0
    %280 = vmatprep.subr.bf16.mxu0 0
    %281 = vmatpush1.bf16.msra.mxu0 0
    %282 = vmatprep.subr.bf16.mxu0 0
    %283 = vmatpush1.bf16.msra.mxu0 0
    %284 = vmatprep.subr.bf16.mxu0 0
    %285 = vmatpush1.bf16.msra.mxu0 0
    %286 = vmatprep.mubr.bf16.mxu0 0
    %287 = vmatmul.mubr.bf16.gmra.mrb[0].mxu0 %v182
    %v288 = vpop.f32.mrb[0].mxu0
    %v289 = vadd.f32 %v204, %v288
    %v290 = vpop.f32.mrb[0].mxu0
    %v291 = vpop.f32.mrb[0].mxu0
    %v292 = vpop.f32.mrb[0].mxu0
    %293 = vdwg.mxu0
    %v294 = vmax.f32 %v289, 0.0
    %v295 = vpack.c.bf16 %v294, %v294
    %v296 = vld [vmem:[#allocation8] sm:$0xf]
    %v297 = vld [vmem:[#allocation8 + $0x4] sm:$0xf]
    %v298 = vld [vmem:[#allocation8 + $0x8] sm:$0xf]
    %v299 = vld [vmem:[#allocation8 + $0xc] sm:$0xf]
    %v300 = vld [vmem:[#allocation8 + $0x10] sm:$0xf]
    %v301 = vld [vmem:[#allocation8 + $0x14] sm:$0xf]
    %v302 = vld [vmem:[#allocation8 + $0x18] sm:$0xf]
    %v303 = vld [vmem:[#allocation8 + $0x1c] sm:$0xf]
    %v304 = vld [vmem:[#allocation8 + $0x20] sm:$0xf]
    %v305 = vld [vmem:[#allocation8 + $0x24] sm:$0xf]
    %v306 = vld [vmem:[#allocation8 + $0x28] sm:$0xf]
    %v307 = vld [vmem:[#allocation8 + $0x2c] sm:$0xf]
    %v308 = vld [vmem:[#allocation8 + $0x30] sm:$0xf]
    %v309 = vld [vmem:[#allocation8 + $0x34] sm:$0xf]
    %v310 = vld [vmem:[#allocation8 + $0x38] sm:$0xf]
    %v311 = vld [vmem:[#allocation8 + $0x3c] sm:$0xf]
    %v312 = vld [vmem:[%s7] sm:$0x1]
    %v314 = vlaneseq
    %v315 = vshrl.u32 %v314, 7
    %v316 = vsub.s32 0, %v315
    %v317 = vrot.slane %v312, %v316
    %v335 = vunpack.c.l.b16 %v296
    %v336 = vunpack.c.l.b16 %v297
    %v337 = vunpack.c.l.b16 %v298
    %v338 = vunpack.c.l.b16 %v299
    %v339 = vunpack.c.l.b16 %v300
    %v340 = vunpack.c.l.b16 %v301
    %v341 = vunpack.c.l.b16 %v302
    %v342 = vunpack.c.l.b16 %v303
    %v343 = vunpack.c.l.b16 %v304
    %v344 = vunpack.c.l.b16 %v305
    %v345 = vunpack.c.l.b16 %v306
    %v346 = vunpack.c.l.b16 %v307
    %v347 = vunpack.c.l.b16 %v308
    %v348 = vunpack.c.l.b16 %v309
    %v349 = vunpack.c.l.b16 %v310
    %v350 = vunpack.c.l.b16 %v311
    %v351 = vpack.c.b16 %v336, %v335
    %v352 = vpack.c.b16 %v338, %v337
    %v353 = vpack.c.b16 %v340, %v339
    %v354 = vpack.c.b16 %v342, %v341
    %v355 = vpack.c.b16 %v344, %v343
    %v356 = vpack.c.b16 %v346, %v345
    %v357 = vpack.c.b16 %v348, %v347
    %v358 = vpack.c.b16 %v350, %v349
    %367 = vmatprep.subr.bf16.mxu0 0
    %368 = vmatpush1.bf16.msra.mxu0 %v351
    %369 = vmatprep.subr.bf16.mxu0 0
    %370 = vmatpush1.bf16.msra.mxu0 %v352
    %371 = vmatprep.subr.bf16.mxu0 0
    %372 = vmatpush1.bf16.msra.mxu0 %v353
    %373 = vmatprep.subr.bf16.mxu0 0
    %374 = vmatpush1.bf16.msra.mxu0 %v354
    %375 = vmatprep.subr.bf16.mxu0 0
    %376 = vmatpush1.bf16.msra.mxu0 %v355
    %377 = vmatprep.subr.bf16.mxu0 0
    %378 = vmatpush1.bf16.msra.mxu0 %v356
    %379 = vmatprep.subr.bf16.mxu0 0
    %380 = vmatpush1.bf16.msra.mxu0 %v357
    %381 = vmatprep.subr.bf16.mxu0 0
    %382 = vmatpush1.bf16.msra.mxu0 %v358
    %383 = vmatprep.subr.bf16.mxu0 0
    %384 = vmatpush1.bf16.msra.mxu0 0
    %385 = vmatprep.subr.bf16.mxu0 0
    %386 = vmatpush1.bf16.msra.mxu0 0
    %387 = vmatprep.subr.bf16.mxu0 0
    %388 = vmatpush1.bf16.msra.mxu0 0
    %389 = vmatprep.subr.bf16.mxu0 0
    %390 = vmatpush1.bf16.msra.mxu0 0
    %391 = vmatprep.subr.bf16.mxu0 0
    %392 = vmatpush1.bf16.msra.mxu0 0
    %393 = vmatprep.subr.bf16.mxu0 0
    %394 = vmatpush1.bf16.msra.mxu0 0
    %395 = vmatprep.subr.bf16.mxu0 0
    %396 = vmatpush1.bf16.msra.mxu0 0
    %397 = vmatprep.subr.bf16.mxu0 0
    %398 = vmatpush1.bf16.msra.mxu0 0
    %399 = vmatprep.mubr.bf16.mxu0 0
    %400 = vmatmul.mubr.bf16.gmra.mrb[0].mxu0 %v295
    %v401 = vpop.f32.mrb[0].mxu0
    %v402 = vadd.f32 %v317, %v401
    %v403 = vpop.f32.mrb[0].mxu0
    %v404 = vpop.f32.mrb[0].mxu0
    %v405 = vpop.f32.mrb[0].mxu0
    %406 = vdwg.mxu0
    %v407 = vmax.f32 %v402, 0.0
    %v408 = vand.u32 2147483647, %v402
    %v409 = vsub.f32 0.0, %v408
    %v410 = vmul.f32 %v409, 1.442695
    %v411 = vpow.pop %v410
    %v412 = vadd.f32 %v411, 1.0
    %v413 = vlog2.pop %v412
    %v414 = vmul.f32 %v413, 0.6931472
    %v415 = vmul.f32 -0.5, %v411
    %v416 = vadd.f32 %v415, 1.0
    %v417 = vmul.f32 %v416, %v411
    %v418 = vand.u32 2147483647, %v411
    %vm419 = vcmp.lt.f32.partialorder %v418, 0.0004427343
    %v420 = vsel %vm419, %v417, %v414
    %v421 = vadd.f32 %v407, %v420
    %422 = vst [vmem:[#allocation10] sm:$0xff] %v421
    // Predicated region
    $region50: #{tpu_custom_call.1} parent=1 // pred_check
      _
    $region51: #{tpu_custom_call.1} parent=1 // pred_check_branch
      %424 = sbr.rel (0) target = $region53
    $region52: #{tpu_custom_call.1} parent=1 // pred_region
      %s426 = ssub.s32 128, 128
      %427 = vsyncadd [#allocation4], %s426
      %s429 = sshll.u32 [#allocation10], 4
      %s430 = int_to_ptr.vmem [resolvable:$true] %s429
      %432 = dma.vmem_to_hbm [thread:$0]  %s430, 128, %s8, [#allocation4]
    $region53: #{tpu_custom_call.1} parent=1 // pred_fallthru
      _
    // Predicated region
    $region54: #{tpu_custom_call.1} parent=1 // pred_check
      _
    $region55: #{tpu_custom_call.1} parent=1 // pred_check_branch
      %434 = sbr.rel (0) target = $region57
    $region56: #{tpu_custom_call.1} parent=1 // pred_region
      %435 = dma.done [#allocation4], 128
    $region57: #{tpu_custom_call.1} parent=1 // pred_fallthru
      _
    %436 = vsyncpa [#allocation3], 1
    %437 = vsyncpa [#allocation6], 1
    %438 = vsyncpa [#allocation9], 1
    %439 = vsyncpa [#allocation4], 1

</llo_original>
